<compile_context>
chip_gen: v6e
topology: v6e:2x2x1
jax: 0.10.0
libtpu: 0.0.40
codegen_flags: <defaults>
</compile_context>

<pallas_src>
import math
from functools import partial

import jax
import jax.numpy as jnp
from jax.experimental import pallas as pl
from jax.experimental.pallas import tpu as pltpu

_MASK_VALUE = -1e30  # exp(masked - rowmax) underflows to exactly 0.0 in f32


def _cdiv(a, b):
    return (a + b - 1) // b


def _default_vmem_budget_bytes():
    """Half the physical VMEM, capped at 64 MiB (v5e/v6e: 64 MiB, v7x: 32 MiB)."""
    cap = 64 * 1024 * 1024
    try:
        cap = int(pltpu.get_tpu_info().vmem_capacity_bytes)
    except Exception:  # interpret mode / older runtimes: fall back conservatively
        pass
    return max(16 * 1024 * 1024, min(cap // 2, 64 * 1024 * 1024))


def _ball_attn_kernel(bias_ref, q_ref, k_ref, v_ref, o_ref, *,
                      scale, s_per_step, compute_dtype):
    # bias_ref: (R, R) f32 block-diagonal additive mask, resident across steps.
    # q/k/v/o refs: (S, R, Dh) VMEM tiles; every `ball_size` consecutive rows
    # of a super-block form one independent attention group.
    bias = bias_ref[...]

    @pl.loop(0, s_per_step)
    def _(s):
        # Fold the 1/sqrt(Dh) scale into the small (R, Dh) q tile and cast the
        # matmul operands to bf16 (single-pass MXU issue, f32 accumulation).
        q = (q_ref[s] * scale).astype(compute_dtype)        # (R, Dh)
        k = k_ref[s].astype(compute_dtype)                   # (R, Dh)
        v = v_ref[s].astype(compute_dtype)                   # (R, Dh)

        # QK^T contracted over head_dim (no explicit transpose), f32 scores.
        sc = jnp.einsum("rd,cd->rc", q, k,
                        preferred_element_type=jnp.float32)  # (R, R)
        sc = sc + bias

        # Numerically stable softmax in f32; masked lanes become exact zeros.
        m = jnp.max(sc, axis=-1, keepdims=True)
        p = jnp.exp(sc - m)
        l = jnp.sum(p, axis=-1, keepdims=True)

        # PV matmul with bf16 operands / f32 accumulation; normalize the small
        # (R, Dh) output with the (free) EUP approximate reciprocal.
        pv = jnp.einsum("rc,cd->rd", p.astype(compute_dtype), v,
                        preferred_element_type=jnp.float32)  # (R, Dh)
        o_ref[s] = (pv * pl.reciprocal(l, approx=True)).astype(o_ref.dtype)


def ball_attention(q, k, v, *, ball_size,
                   target_rows_per_tile=4096,
                   compute_dtype=jnp.bfloat16,
                   vmem_limit_bytes=None):
    """Pallas implementation of BallAttention.forward.

    q, k, v: (B, H, n, Dh). Attention is computed independently within each
    contiguous block ("ball") of `ball_size` tokens along the sequence.
    """
    B, H, n, Dh = q.shape
    assert n % ball_size == 0, "sequence length must be a multiple of ball_size"
    total_rows = B * H * n
    num_balls = total_rows // ball_size
    scale = 1.0 / math.sqrt(Dh)

    # --- super-block geometry: pack balls into ~128-row MXU-friendly tiles ---
    balls_per_block = max(1, 128 // ball_size)
    R = balls_per_block * ball_size
    num_blocks = _cdiv(num_balls, balls_per_block)   # padded balls allowed

    # --- per-generation VMEM budget and super-blocks per grid step (S) ------
    if vmem_limit_bytes is None:
        vmem_limit_bytes = _default_vmem_budget_bytes()
    itemsize = jnp.dtype(q.dtype).itemsize
    per_s_bytes = 2 * 4 * R * Dh * itemsize          # double-buffered q,k,v,o tiles
    reserve = 6 * 1024 * 1024                        # bias + intermediates + scratch
    max_s_vmem = max(1, (vmem_limit_bytes - reserve) // per_s_bytes)

    S = max(1, min(target_rows_per_tile // R, max_s_vmem, num_blocks))
    if num_blocks >= 2:
        # Keep the (parallel) grid at >= 2 steps so both v7x TensorCores work.
        S = max(1, min(S, _cdiv(num_blocks, 2)))

    num_blocks_padded = _cdiv(num_blocks, S) * S
    grid = (num_blocks_padded // S,)
    rows_padded = num_blocks_padded * R
    pad_rows = rows_padded - total_rows              # whole zero balls, sliced off

    def to_blocks(x):
        x = x.reshape(total_rows, Dh)
        if pad_rows:
            x = jnp.pad(x, ((0, pad_rows), (0, 0)))
        return x.reshape(num_blocks_padded, R, Dh)

    # Resident block-diagonal additive bias (0 inside ball, -1e30 outside).
    ball_id = jnp.arange(R, dtype=jnp.int32) // ball_size
    bias = jnp.where(ball_id[:, None] == ball_id[None, :],
                     0.0, _MASK_VALUE).astype(jnp.float32)

    io_spec = pl.BlockSpec((S, R, Dh), lambda i: (i, 0, 0))
    bias_spec = pl.BlockSpec((R, R), lambda i: (0, 0))

    cost = pl.CostEstimate(
        flops=4 * num_blocks_padded * R * R * Dh,            # QK^T + PV
        transcendentals=num_blocks_padded * R * R,           # exp
        bytes_accessed=4 * num_blocks_padded * R * Dh * itemsize + R * R * 4,
    )

    out_blocks = pl.pallas_call(
        partial(_ball_attn_kernel, scale=scale, s_per_step=S,
                compute_dtype=compute_dtype),
        grid=grid,
        in_specs=[bias_spec, io_spec, io_spec, io_spec],
        out_specs=io_spec,
        out_shape=jax.ShapeDtypeStruct((num_blocks_padded, R, Dh), q.dtype),
        compiler_params=pltpu.CompilerParams(
            dimension_semantics=("parallel",),
            vmem_limit_bytes=int(vmem_limit_bytes),
        ),
        cost_estimate=cost,
    )(bias, to_blocks(q), to_blocks(k), to_blocks(v))

    out = out_blocks.reshape(rows_padded, Dh)[:total_rows]
    return out.reshape(B, H, n, Dh)


def _reference(q, k, v, ball_size, compute_dtype=None):
    """Pure-JAX reference. compute_dtype!=None emulates the kernel's bf16 casts."""
    B, H, n, Dh = q.shape
    mb = n // ball_size
    scale = 1.0 / math.sqrt(Dh)

    def cast(x):
        if compute_dtype is None:
            return x.astype(jnp.float32)
        return x.astype(compute_dtype).astype(jnp.float32)

    qb = cast(q * scale).reshape(B, H, mb, ball_size, Dh)
    kb = cast(k).reshape(B, H, mb, ball_size, Dh)
    vb = cast(v).reshape(B, H, mb, ball_size, Dh)
    s = jnp.einsum("bhmqd,bhmkd->bhmqk", qb, kb)
    p = jax.nn.softmax(s, axis=-1)
    if compute_dtype is not None:
        p = p.astype(compute_dtype).astype(jnp.float32)
    o = jnp.einsum("bhmqk,bhmkd->bhmqd", p, vb)
    return o.reshape(B, H, n, Dh).astype(q.dtype)


if __name__ == "__main__":
    # Module config: num_heads=4, head_dim=32, ball_size=8.
    num_heads, head_dim, ball_size = 4, 32, 8

    attn = jax.jit(lambda q, k, v: ball_attention(q, k, v, ball_size=ball_size))

    def run_check(B, n, key):
        kq, kk, kv = jax.random.split(key, 3)
        q = jax.random.normal(kq, (B, num_heads, n, head_dim), dtype=jnp.float32)
        k = jax.random.normal(kk, (B, num_heads, n, head_dim), dtype=jnp.float32)
        v = jax.random.normal(kv, (B, num_heads, n, head_dim), dtype=jnp.float32)
        out = jax.block_until_ready(attn(q, k, v))
        assert out.shape == (B, num_heads, n, head_dim)
        # Tight check vs a reference with the same bf16 operand casts
        # (covers the approximate EUP reciprocal and accumulation order).
        ref_bf16 = _reference(q, k, v, ball_size, compute_dtype=jnp.bfloat16)
        assert jnp.allclose(out, ref_bf16, atol=1e-2, rtol=1e-2), "mismatch vs bf16 ref"
        # Loose check vs the full-f32 module semantics.
        ref_f32 = _reference(q, k, v, ball_size)
        assert jnp.allclose(out, ref_f32, atol=5e-2, rtol=5e-2), "mismatch vs f32 ref"

    key = jax.random.PRNGKey(0)
    k_small, k_large, k_ragged = jax.random.split(key, 3)
    run_check(2, 16, k_small)      # small shape implied by the module config
    run_check(2, 1024, k_large)    # multi-super-block, multi-grid-step path
    run_check(1, 72, k_ragged)     # exercises ball / super-block zero-padding
    print("KERNEL_OK")
</pallas_src>

<mosaic_0001>
module attributes {stable_mosaic.version = 11 : i64} {
  func.func @_ball_attn_kernel(%arg0: i32, %arg1: memref<128x128xf32, #tpu.memory_space<vmem>>, %arg2: memref<1x128x32xf32, #tpu.memory_space<vmem>>, %arg3: memref<1x128x32xf32, #tpu.memory_space<vmem>>, %arg4: memref<1x128x32xf32, #tpu.memory_space<vmem>>, %arg5: memref<1x128x32xf32, #tpu.memory_space<vmem>>) attributes {dimension_semantics = [#tpu.dimension_semantics<parallel>], iteration_bounds = array<i64: 1>, scalar_prefetch = 0 : i64, scratch_operands = 0 : i64, tpu.core_type = #tpu.core_type<tc>, window_params = [{pipeline_mode = #tpu.pipeline_mode<synchronous>, transform_indices = @transform_0, window_bounds = array<i64: 128, 128>}, {transform_indices = @transform_1, window_bounds = array<i64: 1, 128, 32>}, {transform_indices = @transform_2, window_bounds = array<i64: 1, 128, 32>}, {transform_indices = @transform_3, window_bounds = array<i64: 1, 128, 32>}, {transform_indices = @transform_4, window_bounds = array<i64: 1, 128, 32>}]} {
    %c0 = arith.constant 0 : index
    %c0_0 = arith.constant 0 : index
    %0 = vector.load %arg1[%c0, %c0_0] : memref<128x128xf32, #tpu.memory_space<vmem>>, vector<128x128xf32>
    %c0_i32 = arith.constant 0 : i32
    %c1_i32 = arith.constant 1 : i32
    %1 = arith.muli %c0_i32, %c1_i32 : i32
    %c0_i32_1 = arith.constant 0 : i32
    %2 = arith.addi %c0_i32_1, %1 : i32
    %3 = arith.index_cast %2 : i32 to index
    %c0_2 = arith.constant 0 : index
    %c0_3 = arith.constant 0 : index
    %4 = vector.load %arg2[%3, %c0_2, %c0_3] : memref<1x128x32xf32, #tpu.memory_space<vmem>>, vector<1x128x32xf32>
    %5 = vector.shape_cast %4 : vector<1x128x32xf32> to vector<128x32xf32>
    %cst = arith.constant 0.176776692 : f32
    %6 = vector.broadcast %cst : f32 to vector<128x32xf32>
    %7 = arith.mulf %5, %6 : vector<128x32xf32>
    %8 = arith.truncf %7 : vector<128x32xf32> to vector<128x32xbf16>
    %9 = arith.index_cast %2 : i32 to index
    %c0_4 = arith.constant 0 : index
    %c0_5 = arith.constant 0 : index
    %10 = vector.load %arg3[%9, %c0_4, %c0_5] : memref<1x128x32xf32, #tpu.memory_space<vmem>>, vector<1x128x32xf32>
    %11 = vector.shape_cast %10 : vector<1x128x32xf32> to vector<128x32xf32>
    %12 = arith.truncf %11 : vector<128x32xf32> to vector<128x32xbf16>
    %13 = arith.index_cast %2 : i32 to index
    %c0_6 = arith.constant 0 : index
    %c0_7 = arith.constant 0 : index
    %14 = vector.load %arg4[%13, %c0_6, %c0_7] : memref<1x128x32xf32, #tpu.memory_space<vmem>>, vector<1x128x32xf32>
    %15 = vector.shape_cast %14 : vector<1x128x32xf32> to vector<128x32xf32>
    %16 = arith.truncf %15 : vector<128x32xf32> to vector<128x32xbf16>
    "tpu.trace_start"() <{level = 10 : i32, message = "rd,cd->rc"}> : () -> ()
    %cst_8 = arith.constant dense<0.000000e+00> : vector<128x128xf32>
    %17 = tpu.matmul %8, %12, %cst_8 {dimension_numbers = #tpu.dot_dimension_numbers<[1], [1], [0], [0], [0, 0, 1, 0], [], []>} : vector<128x32xbf16>, vector<128x32xbf16>, vector<128x128xf32> -> vector<128x128xf32>
    "tpu.trace_stop"() : () -> ()
    %18 = arith.addf %17, %0 : vector<128x128xf32>
    %cst_9 = arith.constant dense<0xFF800000> : vector<128xf32>
    %19 = vector.multi_reduction <maximumf>, %18, %cst_9 [1] : vector<128x128xf32> to vector<128xf32>
    %20 = vector.shape_cast %19 : vector<128xf32> to vector<128x1xf32>
    %21 = vector.broadcast %20 : vector<128x1xf32> to vector<128x128xf32>
    %22 = arith.subf %18, %21 : vector<128x128xf32>
    %23 = math.exp %22 : vector<128x128xf32>
    %cst_10 = arith.constant dense<0.000000e+00> : vector<128xf32>
    %24 = vector.multi_reduction <add>, %23, %cst_10 [1] : vector<128x128xf32> to vector<128xf32>
    %25 = vector.shape_cast %24 : vector<128xf32> to vector<128x1xf32>
    %26 = arith.truncf %23 : vector<128x128xf32> to vector<128x128xbf16>
    "tpu.trace_start"() <{level = 10 : i32, message = "rc,cd->rd"}> : () -> ()
    %cst_11 = arith.constant dense<0.000000e+00> : vector<128x32xf32>
    %27 = tpu.matmul %26, %16, %cst_11 {dimension_numbers = #tpu.dot_dimension_numbers<[1], [0], [0], [1], [0, 0, 1, 1], [], []>} : vector<128x128xbf16>, vector<128x32xbf16>, vector<128x32xf32> -> vector<128x32xf32>
    "tpu.trace_stop"() : () -> ()
    %28 = tpu.reciprocal %25 {approx = true} : vector<128x1xf32> -> vector<128x1xf32>
    %29 = vector.broadcast %28 : vector<128x1xf32> to vector<128x32xf32>
    %30 = arith.mulf %27, %29 : vector<128x32xf32>
    %31 = arith.index_cast %2 : i32 to index
    %c0_12 = arith.constant 0 : index
    %c0_13 = arith.constant 0 : index
    %32 = vector.load %arg5[%31, %c0_12, %c0_13] : memref<1x128x32xf32, #tpu.memory_space<vmem>>, vector<1x128x32xf32>
    %33 = vector.shape_cast %32 : vector<1x128x32xf32> to vector<128x32xf32>
    %34 = vector.shape_cast %30 : vector<128x32xf32> to vector<1x128x32xf32>
    tpu.vector_store %arg5[%31, %c0_12, %c0_13], %34 {strides = array<i32>} : memref<1x128x32xf32, #tpu.memory_space<vmem>>, vector<1x128x32xf32>,
    %c1_i32_14 = arith.constant 1 : i32
    return
  }
  func.func @transform_0(%arg0: i32) -> (i32, i32) {
    %c0_i32 = arith.constant 0 : i32
    %c0_i32_0 = arith.constant 0 : i32
    %c0_i32_1 = arith.constant 0 : i32
    return %c0_i32, %c0_i32_0 : i32, i32
  }
  func.func @transform_1(%arg0: i32) -> (i32, i32, i32) {
    %c0_i32 = arith.constant 0 : i32
    %c0_i32_0 = arith.constant 0 : i32
    %c0_i32_1 = arith.constant 0 : i32
    return %arg0, %c0_i32, %c0_i32_0 : i32, i32, i32
  }
  func.func @transform_2(%arg0: i32) -> (i32, i32, i32) {
    %c0_i32 = arith.constant 0 : i32
    %c0_i32_0 = arith.constant 0 : i32
    %c0_i32_1 = arith.constant 0 : i32
    return %arg0, %c0_i32, %c0_i32_0 : i32, i32, i32
  }
  func.func @transform_3(%arg0: i32) -> (i32, i32, i32) {
    %c0_i32 = arith.constant 0 : i32
    %c0_i32_0 = arith.constant 0 : i32
    %c0_i32_1 = arith.constant 0 : i32
    return %arg0, %c0_i32, %c0_i32_0 : i32, i32, i32
  }
  func.func @transform_4(%arg0: i32) -> (i32, i32, i32) {
    %c0_i32 = arith.constant 0 : i32
    %c0_i32_0 = arith.constant 0 : i32
    %c0_i32_1 = arith.constant 0 : i32
    return %arg0, %c0_i32, %c0_i32_0 : i32, i32, i32
  }
}

</mosaic_0001>

<llo_original>
// kernel: _lambda_.1
$region0: #{_lambda_.1}
  #allocation0 [shape = 'u32[]', space=smem, size = 0x4, offset = 0x4, fixed_abs, tag = 'smem constant byte address 0x4 - core index']
  #allocation1 [shape = 'u32[144,128]{1,0:T(1,128)}', space=vmem, size = 0x12000, scoped, tag = 'internal scratch']
  %s0 = inlined_call_operand.vmem [shape: f32[128,128], index: 0, kind: input, shape index: {}]
  %s1 = inlined_call_operand.vmem [shape: f32[1,128,32], index: 1, kind: input, shape index: {}]
  %s2 = inlined_call_operand.hbm [shape: f32[1,128,32], index: 2, kind: input, shape index: {}]
  %s3 = inlined_call_operand.hbm [shape: f32[1,128,32], index: 3, kind: input, shape index: {}]
  %s4 = inlined_call_operand.hbm [shape: f32[1,128,32], index: 4, kind: output, shape index: {}]
  %s5 = sld [smem:[#allocation0]]
  $region34: #{_lambda_.1} parent=0
    _
  %s7 = ssub.s32 1, %s5
  %s8 = scalar_select 0, %s7, %s5
  $region1: #{_lambda_.1} parent=0
    #allocation2 [shape = 'u8[65536]{0}', space=vmem, size = 0x10000, scoped, tag = 'input window, operand 2, single buffered']
    #allocation3 [shape = 's32[1]{0}', space=sflag, size = 0x4, scoped, tag = 'scoped memory for _lambda_.1']
    #allocation4 [shape = 's32[1]{0}', space=sflag, size = 0x4, scoped, tag = 'scoped memory for _lambda_.1']
    #allocation5 [shape = 'u8[65536]{0}', space=vmem, size = 0x10000, scoped, tag = 'input window, operand 3, single buffered']
    #allocation6 [shape = 's32[1]{0}', space=sflag, size = 0x4, scoped, tag = 'scoped memory for _lambda_.1']
    #allocation7 [shape = 'u8[65536]{0}', space=vmem, size = 0x10000, scoped, tag = 'output window, operand 0, single buffered']
    %9 = vsyncpa [#allocation3], 0
    %10 = vsyncpa [#allocation6], 0
    %11 = vsyncpa [#allocation4], 0
    // Predicated region
    $region2: #{_lambda_.1} parent=1 // pred_check
      _
    $region3: #{_lambda_.1} parent=1 // pred_check_branch
      %13 = sbr.rel (0) target = $region5
    $region4: #{_lambda_.1} parent=1 // pred_region
      _
    $region5: #{_lambda_.1} parent=1 // pred_fallthru
      _
    // Predicated region
    $region6: #{_lambda_.1} parent=1 // pred_check
      _
    $region7: #{_lambda_.1} parent=1 // pred_check_branch
      %15 = sbr.rel (0) target = $region9
    $region8: #{_lambda_.1} parent=1 // pred_region
      _
    $region9: #{_lambda_.1} parent=1 // pred_fallthru
      _
    // Predicated region
    $region10: #{_lambda_.1} parent=1 // pred_check
      _
    $region11: #{_lambda_.1} parent=1 // pred_check_branch
      %17 = sbr.rel (0) target = $region13
    $region12: #{_lambda_.1} parent=1 // pred_region
      %s19 = ssub.s32 2048, 2048
      %20 = vsyncadd [#allocation3], %s19
      %s21 = sshll.u32 [#allocation2], 4
      %s22 = int_to_ptr.vmem [resolvable:$true] %s21
      %27 = dma.hbm_to_vmem [thread:$0]  %s2, 2048, %s22, [#allocation3], 128, 128, 8
    $region13: #{_lambda_.1} parent=1 // pred_fallthru
      _
    // Predicated region
    $region14: #{_lambda_.1} parent=1 // pred_check
      _
    $region15: #{_lambda_.1} parent=1 // pred_check_branch
      %29 = sbr.rel (0) target = $region17
    $region16: #{_lambda_.1} parent=1 // pred_region
      %s31 = ssub.s32 2048, 2048
      %32 = vsyncadd [#allocation6], %s31
      %s33 = sshll.u32 [#allocation5], 4
      %s34 = int_to_ptr.vmem [resolvable:$true] %s33
      %39 = dma.hbm_to_vmem [thread:$0]  %s3, 2048, %s34, [#allocation6], 128, 128, 8
    $region17: #{_lambda_.1} parent=1 // pred_fallthru
      _
    // Predicated region
    $region18: #{_lambda_.1} parent=1 // pred_check
      _
    $region19: #{_lambda_.1} parent=1 // pred_check_branch
      %41 = sbr.rel (0) target = $region21
    $region20: #{_lambda_.1} parent=1 // pred_region
      %42 = dma.done [#allocation3], 2048
    $region21: #{_lambda_.1} parent=1 // pred_fallthru
      _
    // Predicated region
    $region22: #{_lambda_.1} parent=1 // pred_check
      _
    $region23: #{_lambda_.1} parent=1 // pred_check_branch
      %44 = sbr.rel (0) target = $region25
    $region24: #{_lambda_.1} parent=1 // pred_region
      %45 = dma.done [#allocation6], 2048
    $region25: #{_lambda_.1} parent=1 // pred_fallthru
      _
    %v47 = vld [vmem:[%s0] sm:$0xff]
    %v48 = vld [vmem:[%s0 + $0x8] sm:$0xff]
    %v49 = vld [vmem:[%s0 + $0x10] sm:$0xff]
    %v50 = vld [vmem:[%s0 + $0x18] sm:$0xff]
    %v51 = vld [vmem:[%s0 + $0x20] sm:$0xff]
    %v52 = vld [vmem:[%s0 + $0x28] sm:$0xff]
    %v53 = vld [vmem:[%s0 + $0x30] sm:$0xff]
    %v54 = vld [vmem:[%s0 + $0x38] sm:$0xff]
    %v55 = vld [vmem:[%s0 + $0x40] sm:$0xff]
    %v56 = vld [vmem:[%s0 + $0x48] sm:$0xff]
    %v57 = vld [vmem:[%s0 + $0x50] sm:$0xff]
    %v58 = vld [vmem:[%s0 + $0x58] sm:$0xff]
    %v59 = vld [vmem:[%s0 + $0x60] sm:$0xff]
    %v60 = vld [vmem:[%s0 + $0x68] sm:$0xff]
    %v61 = vld [vmem:[%s0 + $0x70] sm:$0xff]
    %v62 = vld [vmem:[%s0 + $0x78] sm:$0xff]
    %v63 = vld [vmem:[%s1] sm:$0xff]
    %v64 = vld [vmem:[%s1 + $0x8] sm:$0xff]
    %v65 = vld [vmem:[%s1 + $0x10] sm:$0xff]
    %v66 = vld [vmem:[%s1 + $0x18] sm:$0xff]
    %v67 = vld [vmem:[%s1 + $0x20] sm:$0xff]
    %v68 = vld [vmem:[%s1 + $0x28] sm:$0xff]
    %v69 = vld [vmem:[%s1 + $0x30] sm:$0xff]
    %v70 = vld [vmem:[%s1 + $0x38] sm:$0xff]
    %v71 = vld [vmem:[%s1 + $0x40] sm:$0xff]
    %v72 = vld [vmem:[%s1 + $0x48] sm:$0xff]
    %v73 = vld [vmem:[%s1 + $0x50] sm:$0xff]
    %v74 = vld [vmem:[%s1 + $0x58] sm:$0xff]
    %v75 = vld [vmem:[%s1 + $0x60] sm:$0xff]
    %v76 = vld [vmem:[%s1 + $0x68] sm:$0xff]
    %v77 = vld [vmem:[%s1 + $0x70] sm:$0xff]
    %v78 = vld [vmem:[%s1 + $0x78] sm:$0xff]
    %v79 = vmul.f32 %v63, 0.17677669
    %v80 = vmul.f32 %v64, 0.17677669
    %v81 = vmul.f32 %v65, 0.17677669
    %v82 = vmul.f32 %v66, 0.17677669
    %v83 = vmul.f32 %v67, 0.17677669
    %v84 = vmul.f32 %v68, 0.17677669
    %v85 = vmul.f32 %v69, 0.17677669
    %v86 = vmul.f32 %v70, 0.17677669
    %v87 = vmul.f32 %v71, 0.17677669
    %v88 = vmul.f32 %v72, 0.17677669
    %v89 = vmul.f32 %v73, 0.17677669
    %v90 = vmul.f32 %v74, 0.17677669
    %v91 = vmul.f32 %v75, 0.17677669
    %v92 = vmul.f32 %v76, 0.17677669
    %v93 = vmul.f32 %v77, 0.17677669
    %v94 = vmul.f32 %v78, 0.17677669
    %v95 = vpack.c.bf16 %v80, %v79
    %v96 = vpack.c.bf16 %v82, %v81
    %v97 = vpack.c.bf16 %v84, %v83
    %v98 = vpack.c.bf16 %v86, %v85
    %v99 = vpack.c.bf16 %v88, %v87
    %v100 = vpack.c.bf16 %v90, %v89
    %v101 = vpack.c.bf16 %v92, %v91
    %v102 = vpack.c.bf16 %v94, %v93
    %v103 = vld [vmem:[#allocation2] sm:$0xff]
    %v104 = vld [vmem:[#allocation2 + $0x8] sm:$0xff]
    %v105 = vld [vmem:[#allocation2 + $0x10] sm:$0xff]
    %v106 = vld [vmem:[#allocation2 + $0x18] sm:$0xff]
    %v107 = vld [vmem:[#allocation2 + $0x20] sm:$0xff]
    %v108 = vld [vmem:[#allocation2 + $0x28] sm:$0xff]
    %v109 = vld [vmem:[#allocation2 + $0x30] sm:$0xff]
    %v110 = vld [vmem:[#allocation2 + $0x38] sm:$0xff]
    %v111 = vld [vmem:[#allocation2 + $0x40] sm:$0xff]
    %v112 = vld [vmem:[#allocation2 + $0x48] sm:$0xff]
    %v113 = vld [vmem:[#allocation2 + $0x50] sm:$0xff]
    %v114 = vld [vmem:[#allocation2 + $0x58] sm:$0xff]
    %v115 = vld [vmem:[#allocation2 + $0x60] sm:$0xff]
    %v116 = vld [vmem:[#allocation2 + $0x68] sm:$0xff]
    %v117 = vld [vmem:[#allocation2 + $0x70] sm:$0xff]
    %v118 = vld [vmem:[#allocation2 + $0x78] sm:$0xff]
    %v119 = vpack.c.bf16 %v104, %v103
    %v120 = vpack.c.bf16 %v106, %v105
    %v121 = vpack.c.bf16 %v108, %v107
    %v122 = vpack.c.bf16 %v110, %v109
    %v123 = vpack.c.bf16 %v112, %v111
    %v124 = vpack.c.bf16 %v114, %v113
    %v125 = vpack.c.bf16 %v116, %v115
    %v126 = vpack.c.bf16 %v118, %v117
    %v127 = vld [vmem:[#allocation5] sm:$0xff]
    %v128 = vld [vmem:[#allocation5 + $0x8] sm:$0xff]
    %v129 = vld [vmem:[#allocation5 + $0x10] sm:$0xff]
    %v130 = vld [vmem:[#allocation5 + $0x18] sm:$0xff]
    %v131 = vld [vmem:[#allocation5 + $0x20] sm:$0xff]
    %v132 = vld [vmem:[#allocation5 + $0x28] sm:$0xff]
    %v133 = vld [vmem:[#allocation5 + $0x30] sm:$0xff]
    %v134 = vld [vmem:[#allocation5 + $0x38] sm:$0xff]
    %v135 = vld [vmem:[#allocation5 + $0x40] sm:$0xff]
    %v136 = vld [vmem:[#allocation5 + $0x48] sm:$0xff]
    %v137 = vld [vmem:[#allocation5 + $0x50] sm:$0xff]
    %v138 = vld [vmem:[#allocation5 + $0x58] sm:$0xff]
    %v139 = vld [vmem:[#allocation5 + $0x60] sm:$0xff]
    %v140 = vld [vmem:[#allocation5 + $0x68] sm:$0xff]
    %v141 = vld [vmem:[#allocation5 + $0x70] sm:$0xff]
    %v142 = vld [vmem:[#allocation5 + $0x78] sm:$0xff]
    %v143 = vpack.c.bf16 %v128, %v127
    %v144 = vpack.c.bf16 %v130, %v129
    %v145 = vpack.c.bf16 %v132, %v131
    %v146 = vpack.c.bf16 %v134, %v133
    %v147 = vpack.c.bf16 %v136, %v135
    %v148 = vpack.c.bf16 %v138, %v137
    %v149 = vpack.c.bf16 %v140, %v139
    %v150 = vpack.c.bf16 %v142, %v141
    %vm151 = vcmask 261120
    %v153 = vsel %vm151, %v95, 0
    %v156 = vsel %vm151, %v96, 0
    %v159 = vsel %vm151, %v97, 0
    %v162 = vsel %vm151, %v98, 0
    %v165 = vsel %vm151, %v99, 0
    %v168 = vsel %vm151, %v100, 0
    %v171 = vsel %vm151, %v101, 0
    %v174 = vsel %vm151, %v102, 0
    %v177 = vsel %vm151, %v119, 0
    %v180 = vsel %vm151, %v120, 0
    %v183 = vsel %vm151, %v121, 0
    %v186 = vsel %vm151, %v122, 0
    %v189 = vsel %vm151, %v123, 0
    %v192 = vsel %vm151, %v124, 0
    %v195 = vsel %vm151, %v125, 0
    %v198 = vsel %vm151, %v126, 0
    %200 = vmatprep.subr.bf16.mxu0 0
    %201 = vmatpush1.bf16.xpose.msra.mxu0 %v198
    %202 = vmatprep.subr.bf16.mxu0 0
    %203 = vmatpush1.bf16.xpose.msra.mxu0 %v195
    %204 = vmatprep.subr.bf16.mxu0 0
    %205 = vmatpush1.bf16.xpose.msra.mxu0 %v192
    %206 = vmatprep.subr.bf16.mxu0 0
    %207 = vmatpush1.bf16.xpose.msra.mxu0 %v189
    %208 = vmatprep.subr.bf16.mxu0 0
    %209 = vmatpush1.bf16.xpose.msra.mxu0 %v186
    %210 = vmatprep.subr.bf16.mxu0 0
    %211 = vmatpush1.bf16.xpose.msra.mxu0 %v183
    %212 = vmatprep.subr.bf16.mxu0 0
    %213 = vmatpush1.bf16.xpose.msra.mxu0 %v180
    %214 = vmatprep.subr.bf16.mxu0 0
    %215 = vmatpush1.bf16.xpose.msra.mxu0 %v177
    %216 = vmatprep.subr.bf16.mxu0 0
    %217 = vmatpush2.bf16.xpose.msra.mxu0 0
    %218 = vmatprep.subr.bf16.mxu0 0
    %219 = vmatpush2.bf16.xpose.msra.mxu0 0
    %220 = vmatprep.subr.bf16.mxu0 0
    %221 = vmatpush2.bf16.xpose.msra.mxu0 0
    %222 = vmatprep.subr.bf16.mxu0 0
    %223 = vmatpush2.bf16.xpose.msra.mxu0 0
    %224 = vmatprep.subr.bf16.mxu0 0
    %225 = vmatpush2.bf16.xpose.msra.mxu0 0
    %226 = vmatprep.subr.bf16.mxu0 0
    %227 = vmatpush2.bf16.xpose.msra.mxu0 0
    %228 = vmatprep.subr.bf16.mxu0 0
    %229 = vmatpush2.bf16.xpose.msra.mxu0 0
    %230 = vmatprep.subr.bf16.mxu0 0
    %231 = vmatpush2.bf16.xpose.msra.mxu0 0
    %232 = vmatprep.mubr.bf16.mxu0 0
    %233 = vmatmul.mubr.bf16.gmra.mxu0 %v153
    %v234 = vpop.f32.mrf.mxu0
    %v235 = vadd.f32 %v47, %v234
    %v236 = vpop.f32.mrf.mxu0
    %v237 = vpop.f32.mrf.mxu0
    %v238 = vadd.f32 %v48, %v237
    %v239 = vpop.f32.mrf.mxu0
    %240 = vmatprep.mubr.bf16.mxu0 0
    %241 = vmatmul.mubr.bf16.gmra.mxu0 %v156
    %v242 = vpop.f32.mrf.mxu0
    %v243 = vadd.f32 %v49, %v242
    %v244 = vpop.f32.mrf.mxu0
    %v245 = vpop.f32.mrf.mxu0
    %v246 = vadd.f32 %v50, %v245
    %v247 = vpop.f32.mrf.mxu0
    %248 = vmatprep.mubr.bf16.mxu0 0
    %249 = vmatmul.mubr.bf16.gmra.mxu0 %v159
    %v250 = vpop.f32.mrf.mxu0
    %v251 = vadd.f32 %v51, %v250
    %v252 = vpop.f32.mrf.mxu0
    %v253 = vpop.f32.mrf.mxu0
    %v254 = vadd.f32 %v52, %v253
    %v255 = vpop.f32.mrf.mxu0
    %256 = vmatprep.mubr.bf16.mxu0 0
    %257 = vmatmul.mubr.bf16.gmra.mxu0 %v162
    %v258 = vpop.f32.mrf.mxu0
    %v259 = vadd.f32 %v53, %v258
    %v260 = vpop.f32.mrf.mxu0
    %v261 = vpop.f32.mrf.mxu0
    %v262 = vadd.f32 %v54, %v261
    %v263 = vpop.f32.mrf.mxu0
    %264 = vmatprep.mubr.bf16.mxu0 0
    %265 = vmatmul.mubr.bf16.gmra.mxu0 %v165
    %v266 = vpop.f32.mrf.mxu0
    %v267 = vadd.f32 %v55, %v266
    %v268 = vpop.f32.mrf.mxu0
    %v269 = vpop.f32.mrf.mxu0
    %v270 = vadd.f32 %v56, %v269
    %v271 = vpop.f32.mrf.mxu0
    %272 = vmatprep.mubr.bf16.mxu0 0
    %273 = vmatmul.mubr.bf16.gmra.mxu0 %v168
    %v274 = vpop.f32.mrf.mxu0
    %v275 = vadd.f32 %v57, %v274
    %v276 = vpop.f32.mrf.mxu0
    %v277 = vpop.f32.mrf.mxu0
    %v278 = vadd.f32 %v58, %v277
    %v279 = vpop.f32.mrf.mxu0
    %280 = vmatprep.mubr.bf16.mxu0 0
    %281 = vmatmul.mubr.bf16.gmra.mxu0 %v171
    %v282 = vpop.f32.mrf.mxu0
    %v283 = vadd.f32 %v59, %v282
    %v284 = vpop.f32.mrf.mxu0
    %v285 = vpop.f32.mrf.mxu0
    %v286 = vadd.f32 %v60, %v285
    %v287 = vpop.f32.mrf.mxu0
    %288 = vmatprep.mubr.bf16.mxu0 0
    %289 = vmatmul.mubr.bf16.gmra.mxu0 %v174
    %v290 = vpop.f32.mrf.mxu0
    %v291 = vadd.f32 %v61, %v290
    %v292 = vpop.f32.mrf.mxu0
    %v293 = vpop.f32.mrf.mxu0
    %v294 = vadd.f32 %v62, %v293
    %v295 = vpop.f32.mrf.mxu0
    %296 = vdwg.mxu0
    %297 = vmax.xlane.f32.xlu0 %v235
    %v298 = vpop.xlane.xlu0 %297
    %299 = vmax.xlane.f32.xlu0 %v238
    %v300 = vpop.xlane.xlu0 %299
    %301 = vmax.xlane.f32.xlu0 %v243
    %v302 = vpop.xlane.xlu0 %301
    %303 = vmax.xlane.f32.xlu0 %v246
    %v304 = vpop.xlane.xlu0 %303
    %305 = vmax.xlane.f32.xlu0 %v251
    %v306 = vpop.xlane.xlu0 %305
    %307 = vmax.xlane.f32.xlu0 %v254
    %v308 = vpop.xlane.xlu0 %307
    %309 = vmax.xlane.f32.xlu0 %v259
    %v310 = vpop.xlane.xlu0 %309
    %311 = vmax.xlane.f32.xlu0 %v262
    %v312 = vpop.xlane.xlu0 %311
    %313 = vmax.xlane.f32.xlu0 %v267
    %v314 = vpop.xlane.xlu0 %313
    %315 = vmax.xlane.f32.xlu0 %v270
    %v316 = vpop.xlane.xlu0 %315
    %317 = vmax.xlane.f32.xlu0 %v275
    %v318 = vpop.xlane.xlu0 %317
    %319 = vmax.xlane.f32.xlu0 %v278
    %v320 = vpop.xlane.xlu0 %319
    %321 = vmax.xlane.f32.xlu0 %v283
    %v322 = vpop.xlane.xlu0 %321
    %323 = vmax.xlane.f32.xlu0 %v286
    %v324 = vpop.xlane.xlu0 %323
    %325 = vmax.xlane.f32.xlu0 %v291
    %v326 = vpop.xlane.xlu0 %325
    %327 = vmax.xlane.f32.xlu0 %v294
    %v328 = vpop.xlane.xlu0 %327
    %v329 = vsub.f32 %v235, %v298
    %v330 = vsub.f32 %v238, %v300
    %v331 = vsub.f32 %v243, %v302
    %v332 = vsub.f32 %v246, %v304
    %v333 = vsub.f32 %v251, %v306
    %v334 = vsub.f32 %v254, %v308
    %v335 = vsub.f32 %v259, %v310
    %v336 = vsub.f32 %v262, %v312
    %v337 = vsub.f32 %v267, %v314
    %v338 = vsub.f32 %v270, %v316
    %v339 = vsub.f32 %v275, %v318
    %v340 = vsub.f32 %v278, %v320
    %v341 = vsub.f32 %v283, %v322
    %v342 = vsub.f32 %v286, %v324
    %v343 = vsub.f32 %v291, %v326
    %v344 = vsub.f32 %v294, %v328
    %v345 = vmul.f32 %v329, 1.442695
    %v346 = vpow.pop %v345
    %v347 = vmul.f32 %v330, 1.442695
    %v348 = vpow.pop %v347
    %v349 = vmul.f32 %v331, 1.442695
    %v350 = vpow.pop %v349
    %v351 = vmul.f32 %v332, 1.442695
    %v352 = vpow.pop %v351
    %v353 = vmul.f32 %v333, 1.442695
    %v354 = vpow.pop %v353
    %v355 = vmul.f32 %v334, 1.442695
    %v356 = vpow.pop %v355
    %v357 = vmul.f32 %v335, 1.442695
    %v358 = vpow.pop %v357
    %v359 = vmul.f32 %v336, 1.442695
    %v360 = vpow.pop %v359
    %v361 = vmul.f32 %v337, 1.442695
    %v362 = vpow.pop %v361
    %v363 = vmul.f32 %v338, 1.442695
    %v364 = vpow.pop %v363
    %v365 = vmul.f32 %v339, 1.442695
    %v366 = vpow.pop %v365
    %v367 = vmul.f32 %v340, 1.442695
    %v368 = vpow.pop %v367
    %v369 = vmul.f32 %v341, 1.442695
    %v370 = vpow.pop %v369
    %v371 = vmul.f32 %v342, 1.442695
    %v372 = vpow.pop %v371
    %v373 = vmul.f32 %v343, 1.442695
    %v374 = vpow.pop %v373
    %v375 = vmul.f32 %v344, 1.442695
    %v376 = vpow.pop %v375
    %377 = vadd.xlane.f32.xlu0 %v346
    %v378 = vpop.xlane.xlu0 %377
    %379 = vadd.xlane.f32.xlu0 %v348
    %v380 = vpop.xlane.xlu0 %379
    %381 = vadd.xlane.f32.xlu0 %v350
    %v382 = vpop.xlane.xlu0 %381
    %383 = vadd.xlane.f32.xlu0 %v352
    %v384 = vpop.xlane.xlu0 %383
    %385 = vadd.xlane.f32.xlu0 %v354
    %v386 = vpop.xlane.xlu0 %385
    %387 = vadd.xlane.f32.xlu0 %v356
    %v388 = vpop.xlane.xlu0 %387
    %389 = vadd.xlane.f32.xlu0 %v358
    %v390 = vpop.xlane.xlu0 %389
    %391 = vadd.xlane.f32.xlu0 %v360
    %v392 = vpop.xlane.xlu0 %391
    %393 = vadd.xlane.f32.xlu0 %v362
    %v394 = vpop.xlane.xlu0 %393
    %395 = vadd.xlane.f32.xlu0 %v364
    %v396 = vpop.xlane.xlu0 %395
    %397 = vadd.xlane.f32.xlu0 %v366
    %v398 = vpop.xlane.xlu0 %397
    %399 = vadd.xlane.f32.xlu0 %v368
    %v400 = vpop.xlane.xlu0 %399
    %401 = vadd.xlane.f32.xlu0 %v370
    %v402 = vpop.xlane.xlu0 %401
    %403 = vadd.xlane.f32.xlu0 %v372
    %v404 = vpop.xlane.xlu0 %403
    %405 = vadd.xlane.f32.xlu0 %v374
    %v406 = vpop.xlane.xlu0 %405
    %407 = vadd.xlane.f32.xlu0 %v376
    %v408 = vpop.xlane.xlu0 %407
    %v409 = vpack.c.bf16 %v348, %v346
    %v410 = vpack.c.bf16 %v352, %v350
    %v411 = vpack.c.bf16 %v356, %v354
    %v412 = vpack.c.bf16 %v360, %v358
    %v413 = vpack.c.bf16 %v364, %v362
    %v414 = vpack.c.bf16 %v368, %v366
    %v415 = vpack.c.bf16 %v372, %v370
    %v416 = vpack.c.bf16 %v376, %v374
    %417 = vmatprep.subr.bf16.mxu0 0
    %418 = vmatpush1.bf16.msra.mxu0 %v150
    %419 = vmatprep.subr.bf16.mxu0 0
    %420 = vmatpush1.bf16.msra.mxu0 %v149
    %421 = vmatprep.subr.bf16.mxu0 0
    %422 = vmatpush1.bf16.msra.mxu0 %v148
    %423 = vmatprep.subr.bf16.mxu0 0
    %424 = vmatpush1.bf16.msra.mxu0 %v147
    %425 = vmatprep.subr.bf16.mxu0 0
    %426 = vmatpush1.bf16.msra.mxu0 %v146
    %427 = vmatprep.subr.bf16.mxu0 0
    %428 = vmatpush1.bf16.msra.mxu0 %v145
    %429 = vmatprep.subr.bf16.mxu0 0
    %430 = vmatpush1.bf16.msra.mxu0 %v144
    %431 = vmatprep.subr.bf16.mxu0 0
    %432 = vmatpush1.bf16.msra.mxu0 %v143
    %433 = vmatprep.subr.bf16.mxu0 0
    %434 = vmatpush2.bf16.msra.mxu0 0
    %435 = vmatprep.subr.bf16.mxu0 0
    %436 = vmatpush2.bf16.msra.mxu0 0
    %437 = vmatprep.subr.bf16.mxu0 0
    %438 = vmatpush2.bf16.msra.mxu0 0
    %439 = vmatprep.subr.bf16.mxu0 0
    %440 = vmatpush2.bf16.msra.mxu0 0
    %441 = vmatprep.subr.bf16.mxu0 0
    %442 = vmatpush2.bf16.msra.mxu0 0
    %443 = vmatprep.subr.bf16.mxu0 0
    %444 = vmatpush2.bf16.msra.mxu0 0
    %445 = vmatprep.subr.bf16.mxu0 0
    %446 = vmatpush2.bf16.msra.mxu0 0
    %447 = vmatprep.subr.bf16.mxu0 0
    %448 = vmatpush2.bf16.msra.mxu0 0
    %449 = vmatprep.mubr.bf16.mxu0 0
    %450 = vmatmul.mubr.bf16.gmra.mxu0 %v409
    %v451 = vpop.f32.mrf.mxu0
    %v452 = vadd.f32 0.0, %v451
    %v453 = vpop.f32.mrf.mxu0
    %v454 = vpop.f32.mrf.mxu0
    %v455 = vadd.f32 0.0, %v454
    %v456 = vpop.f32.mrf.mxu0
    %457 = vmatprep.mubr.bf16.mxu0 0
    %458 = vmatmul.mubr.bf16.gmra.mxu0 %v410
    %v459 = vpop.f32.mrf.mxu0
    %v460 = vadd.f32 0.0, %v459
    %v461 = vpop.f32.mrf.mxu0
    %v462 = vpop.f32.mrf.mxu0
    %v463 = vadd.f32 0.0, %v462
    %v464 = vpop.f32.mrf.mxu0
    %465 = vmatprep.mubr.bf16.mxu0 0
    %466 = vmatmul.mubr.bf16.gmra.mxu0 %v411
    %v467 = vpop.f32.mrf.mxu0
    %v468 = vadd.f32 0.0, %v467
    %v469 = vpop.f32.mrf.mxu0
    %v470 = vpop.f32.mrf.mxu0
    %v471 = vadd.f32 0.0, %v470
    %v472 = vpop.f32.mrf.mxu0
    %473 = vmatprep.mubr.bf16.mxu0 0
    %474 = vmatmul.mubr.bf16.gmra.mxu0 %v412
    %v475 = vpop.f32.mrf.mxu0
    %v476 = vadd.f32 0.0, %v475
    %v477 = vpop.f32.mrf.mxu0
    %v478 = vpop.f32.mrf.mxu0
    %v479 = vadd.f32 0.0, %v478
    %v480 = vpop.f32.mrf.mxu0
    %481 = vmatprep.mubr.bf16.mxu0 0
    %482 = vmatmul.mubr.bf16.gmra.mxu0 %v413
    %v483 = vpop.f32.mrf.mxu0
    %v484 = vadd.f32 0.0, %v483
    %v485 = vpop.f32.mrf.mxu0
    %v486 = vpop.f32.mrf.mxu0
    %v487 = vadd.f32 0.0, %v486
    %v488 = vpop.f32.mrf.mxu0
    %489 = vmatprep.mubr.bf16.mxu0 0
    %490 = vmatmul.mubr.bf16.gmra.mxu0 %v414
    %v491 = vpop.f32.mrf.mxu0
    %v492 = vadd.f32 0.0, %v491
    %v493 = vpop.f32.mrf.mxu0
    %v494 = vpop.f32.mrf.mxu0
    %v495 = vadd.f32 0.0, %v494
    %v496 = vpop.f32.mrf.mxu0
    %497 = vmatprep.mubr.bf16.mxu0 0
    %498 = vmatmul.mubr.bf16.gmra.mxu0 %v415
    %v499 = vpop.f32.mrf.mxu0
    %v500 = vadd.f32 0.0, %v499
    %v501 = vpop.f32.mrf.mxu0
    %v502 = vpop.f32.mrf.mxu0
    %v503 = vadd.f32 0.0, %v502
    %v504 = vpop.f32.mrf.mxu0
    %505 = vmatprep.mubr.bf16.mxu0 0
    %506 = vmatmul.mubr.bf16.gmra.mxu0 %v416
    %v507 = vpop.f32.mrf.mxu0
    %v508 = vadd.f32 0.0, %v507
    %v509 = vpop.f32.mrf.mxu0
    %v510 = vpop.f32.mrf.mxu0
    %v511 = vadd.f32 0.0, %v510
    %v512 = vpop.f32.mrf.mxu0
    %513 = vdwg.mxu0
    %v514 = vrcp.pop %v378
    %v515 = vrcp.pop %v380
    %v516 = vrcp.pop %v382
    %v517 = vrcp.pop %v384
    %v518 = vrcp.pop %v386
    %v519 = vrcp.pop %v388
    %v520 = vrcp.pop %v390
    %v521 = vrcp.pop %v392
    %v522 = vrcp.pop %v394
    %v523 = vrcp.pop %v396
    %v524 = vrcp.pop %v398
    %v525 = vrcp.pop %v400
    %v526 = vrcp.pop %v402
    %v527 = vrcp.pop %v404
    %v528 = vrcp.pop %v406
    %v529 = vrcp.pop %v408
    %v530 = vmul.f32 %v452, %v514
    %v531 = vmul.f32 %v455, %v515
    %v532 = vmul.f32 %v460, %v516
    %v533 = vmul.f32 %v463, %v517
    %v534 = vmul.f32 %v468, %v518
    %v535 = vmul.f32 %v471, %v519
    %v536 = vmul.f32 %v476, %v520
    %v537 = vmul.f32 %v479, %v521
    %v538 = vmul.f32 %v484, %v522
    %v539 = vmul.f32 %v487, %v523
    %v540 = vmul.f32 %v492, %v524
    %v541 = vmul.f32 %v495, %v525
    %v542 = vmul.f32 %v500, %v526
    %v543 = vmul.f32 %v503, %v527
    %v544 = vmul.f32 %v508, %v528
    %v545 = vmul.f32 %v511, %v529
    %546 = vst.msk [vmem:[#allocation7] sm:$0xff] %vm151, %v530
    %547 = vst.msk [vmem:[#allocation7 + $0x8] sm:$0xff] %vm151, %v531
    %548 = vst.msk [vmem:[#allocation7 + $0x10] sm:$0xff] %vm151, %v532
    %549 = vst.msk [vmem:[#allocation7 + $0x18] sm:$0xff] %vm151, %v533
    %550 = vst.msk [vmem:[#allocation7 + $0x20] sm:$0xff] %vm151, %v534
    %551 = vst.msk [vmem:[#allocation7 + $0x28] sm:$0xff] %vm151, %v535
    %552 = vst.msk [vmem:[#allocation7 + $0x30] sm:$0xff] %vm151, %v536
    %553 = vst.msk [vmem:[#allocation7 + $0x38] sm:$0xff] %vm151, %v537
    %554 = vst.msk [vmem:[#allocation7 + $0x40] sm:$0xff] %vm151, %v538
    %555 = vst.msk [vmem:[#allocation7 + $0x48] sm:$0xff] %vm151, %v539
    %556 = vst.msk [vmem:[#allocation7 + $0x50] sm:$0xff] %vm151, %v540
    %557 = vst.msk [vmem:[#allocation7 + $0x58] sm:$0xff] %vm151, %v541
    %558 = vst.msk [vmem:[#allocation7 + $0x60] sm:$0xff] %vm151, %v542
    %559 = vst.msk [vmem:[#allocation7 + $0x68] sm:$0xff] %vm151, %v543
    %560 = vst.msk [vmem:[#allocation7 + $0x70] sm:$0xff] %vm151, %v544
    %561 = vst.msk [vmem:[#allocation7 + $0x78] sm:$0xff] %vm151, %v545
    // Predicated region
    $region26: #{_lambda_.1} parent=1 // pred_check
      _
    $region27: #{_lambda_.1} parent=1 // pred_check_branch
      %563 = sbr.rel (0) target = $region29
    $region28: #{_lambda_.1} parent=1 // pred_region
      %s565 = ssub.s32 2048, 2048
      %566 = vsyncadd [#allocation4], %s565
      %s567 = sshll.u32 [#allocation7], 4
      %s568 = int_to_ptr.vmem [resolvable:$true] %s567
      %573 = dma.vmem_to_hbm [thread:$0]  %s568, 2048, %s4, [#allocation4], 128, 128, 8
    $region29: #{_lambda_.1} parent=1 // pred_fallthru
      _
    // Predicated region
    $region30: #{_lambda_.1} parent=1 // pred_check
      _
    $region31: #{_lambda_.1} parent=1 // pred_check_branch
      %575 = sbr.rel (0) target = $region33
    $region32: #{_lambda_.1} parent=1 // pred_region
      %576 = dma.done [#allocation4], 2048
    $region33: #{_lambda_.1} parent=1 // pred_fallthru
      _
    %577 = vsyncpa [#allocation3], 1
    %578 = vsyncpa [#allocation6], 1
    %579 = vsyncpa [#allocation4], 1

</llo_original>
